<compile_context>
chip_gen: v7x
topology: tpu7x:2x2x1
jax: 0.10.0
libtpu: 0.0.40
codegen_flags: <defaults>
</compile_context>

<pallas_src>
import jax
import jax.numpy as jnp
from jax.experimental import pallas as pl
from jax.experimental.pallas import tpu as pltpu


def _embed_gather_kernel(ids_ref, w_ref, p1_ref, p2_ref, out_ref):
    # ids_ref: (3, Mpad) int32 in SMEM (unused in body; drives the index_maps)
    # w_ref:   (1, 1, Dw)  gathered word-embedding row for this token
    # p1_ref:  (1, 1, Dp)  gathered pos1 row
    # p2_ref:  (1, 1, Dp)  gathered pos2 row
    # out_ref: (TM, Dtot)  output tile, resident across the inner token axis
    del ids_ref
    j = pl.program_id(1)                      # token index within the tile
    dw = w_ref.shape[-1]
    dp = p1_ref.shape[-1]
    # Fused concat: write the three gathered rows into disjoint lane ranges of
    # row j.  (Small masked stores; negligible vs. the row-gather DMAs.)
    out_ref[pl.ds(j, 1), 0:dw] = w_ref[0].astype(out_ref.dtype)
    out_ref[pl.ds(j, 1), dw:dw + dp] = p1_ref[0].astype(out_ref.dtype)
    out_ref[pl.ds(j, 1), dw + dp:dw + 2 * dp] = p2_ref[0].astype(out_ref.dtype)


def embedding_forward(ids, pos1, pos2, w_word, w_pos1, w_pos2,
                      *, tokens_per_tile=8):
    """Pallas equivalent of Embedding.forward with position=True.

    NOTE: like torch.nn.Embedding, this assumes in-range ids
    (0 <= id < vocab); out-of-range ids are undefined behavior here
    (torch raises).  padding_idx only affects gradients, not the forward
    lookup, so plain gathers match the reference exactly.
    """
    B, S = ids.shape
    Vw, Dw = w_word.shape
    Vp, Dp = w_pos1.shape
    assert w_pos2.shape == (Vp, Dp)
    Dtot = Dw + 2 * Dp

    TM = tokens_per_tile
    M = B * S
    Mpad = pl.cdiv(M, TM) * TM

    # (3, Mpad) id matrix for SMEM scalar prefetch: long axis last so SMEM
    # padding stays small (a (M, 3) layout would pad 3 lanes to 128).
    ids3 = jnp.stack(
        [ids.reshape(-1), pos1.reshape(-1), pos2.reshape(-1)],
        axis=0).astype(jnp.int32)
    if Mpad > M:
        ids3 = jnp.pad(ids3, ((0, 0), (0, Mpad - M)))   # pad tokens gather row 0

    # Row-gather views: (V, 1, D) so one (1, 1, D) block == one table row.
    # Pure metadata reshape -- no per-call table construction / HBM traffic.
    w3 = w_word.reshape(Vw, 1, Dw)
    p13 = w_pos1.reshape(Vp, 1, Dp)
    p23 = w_pos2.reshape(Vp, 1, Dp)

    grid = (Mpad // TM, TM)

    out = pl.pallas_call(
        _embed_gather_kernel,
        out_shape=jax.ShapeDtypeStruct((Mpad, Dtot), w_word.dtype),
        grid_spec=pltpu.PrefetchScalarGridSpec(
            num_scalar_prefetch=1,
            grid=grid,
            in_specs=[
                pl.BlockSpec((1, 1, Dw),
                             lambda ti, j, ids: (ids[0, ti * TM + j], 0, 0)),
                pl.BlockSpec((1, 1, Dp),
                             lambda ti, j, ids: (ids[1, ti * TM + j], 0, 0)),
                pl.BlockSpec((1, 1, Dp),
                             lambda ti, j, ids: (ids[2, ti * TM + j], 0, 0)),
            ],
            out_specs=pl.BlockSpec((TM, Dtot), lambda ti, j, ids: (ti, 0)),
        ),
        compiler_params=pltpu.CompilerParams(
            dimension_semantics=("parallel", "arbitrary"),
            vmem_limit_bytes=32 * 1024 * 1024,
        ),
    )(ids3, w3, p13, p23)

    return out[:M].reshape(B, S, Dtot)


def embedding_ref(ids, pos1, pos2, w_word, w_pos1, w_pos2):
    """Pure-JAX reference (three nn.Embedding lookups + cat along dim 2)."""
    return jnp.concatenate(
        [w_word[ids], w_pos1[pos1], w_pos2[pos2]], axis=2)


if __name__ == "__main__":
    # Module hyperparameters (small, consistent with __init__):
    n_word, n_pos = 30, 20
    input_size, pos_size = 32, 8
    B, S = 2, 8

    key = jax.random.PRNGKey(0)
    k_w, k_p1, k_p2, k_ids, k_q1, k_q2 = jax.random.split(key, 6)

    # nn.Embedding(n_word + 2, input_size, padding_idx=n_word + 1):
    # N(0,1) init with the padding row zeroed.
    # TODO(synk): pretrained word_embed.npy load replaced by deterministic init.
    w_word = jax.random.normal(k_w, (n_word + 2, input_size), dtype=jnp.float32)
    w_word = w_word.at[n_word + 1].set(0.0)

    # pos embeddings: uniform(-0.1, 0.1) over (n_pos + 1, pos_size),
    # padding row (index n_pos) zeroed per padding_idx semantics.
    w_pos1 = jax.random.uniform(k_p1, (n_pos + 1, pos_size),
                                minval=-0.1, maxval=0.1, dtype=jnp.float32)
    w_pos1 = w_pos1.at[n_pos].set(0.0)
    w_pos2 = jax.random.uniform(k_p2, (n_pos + 1, pos_size),
                                minval=-0.1, maxval=0.1, dtype=jnp.float32)
    w_pos2 = w_pos2.at[n_pos].set(0.0)

    ids = jax.random.randint(k_ids, (B, S), 0, n_word + 2, dtype=jnp.int32)
    pos1 = jax.random.randint(k_q1, (B, S), 0, n_pos + 1, dtype=jnp.int32)
    pos2 = jax.random.randint(k_q2, (B, S), 0, n_pos + 1, dtype=jnp.int32)

    out = embedding_forward(ids, pos1, pos2, w_word, w_pos1, w_pos2)
    out = jax.block_until_ready(out)

    ref = embedding_ref(ids, pos1, pos2, w_word, w_pos1, w_pos2)
    assert out.shape == (B, S, input_size + 2 * pos_size), out.shape
    assert jnp.allclose(out, ref, atol=1e-6), "mismatch vs reference"

    print("KERNEL_OK")
</pallas_src>

<mosaic_0001>
module attributes {stable_mosaic.version = 11 : i64} {
  func.func @_embed_gather_kernel(%arg0: i32, %arg1: i32, %arg2: memref<3x16xi32, #tpu.memory_space<smem>>, %arg3: memref<1x1x32xf32, #tpu.memory_space<vmem>>, %arg4: memref<1x1x8xf32, #tpu.memory_space<vmem>>, %arg5: memref<1x1x8xf32, #tpu.memory_space<vmem>>, %arg6: memref<8x48xf32, #tpu.memory_space<vmem>>) attributes {dimension_semantics = [#tpu.dimension_semantics<parallel>, #tpu.dimension_semantics<arbitrary>], iteration_bounds = array<i64: 2, 8>, scalar_prefetch = 1 : i64, scratch_operands = 0 : i64, tpu.core_type = #tpu.core_type<tc>, window_params = [{transform_indices = @transform_0, window_bounds = array<i64: 1, 1, 32>}, {transform_indices = @transform_1, window_bounds = array<i64: 1, 1, 8>}, {transform_indices = @transform_2, window_bounds = array<i64: 1, 1, 8>}, {transform_indices = @transform_3, window_bounds = array<i64: 8, 48>}]} {
    %c0 = arith.constant 0 : index
    %c0_0 = arith.constant 0 : index
    %c0_1 = arith.constant 0 : index
    %0 = vector.load %arg3[%c0, %c0_0, %c0_1] : memref<1x1x32xf32, #tpu.memory_space<vmem>>, vector<1x1x32xf32>
    %1 = vector.shape_cast %0 : vector<1x1x32xf32> to vector<1x32xf32>
    %2 = arith.index_cast %arg1 : i32 to index
    %c0_2 = arith.constant 0 : index
    %3 = vector.load %arg6[%2, %c0_2] : memref<8x48xf32, #tpu.memory_space<vmem>>, vector<1x32xf32>
    tpu.vector_store %arg6[%2, %c0_2], %1 {strides = array<i32>} : memref<8x48xf32, #tpu.memory_space<vmem>>, vector<1x32xf32>,
    %c0_3 = arith.constant 0 : index
    %c0_4 = arith.constant 0 : index
    %c0_5 = arith.constant 0 : index
    %4 = vector.load %arg4[%c0_3, %c0_4, %c0_5] : memref<1x1x8xf32, #tpu.memory_space<vmem>>, vector<1x1x8xf32>
    %5 = vector.shape_cast %4 : vector<1x1x8xf32> to vector<1x8xf32>
    %6 = arith.index_cast %arg1 : i32 to index
    %c32 = arith.constant 32 : index
    %7 = vector.load %arg6[%6, %c32] : memref<8x48xf32, #tpu.memory_space<vmem>>, vector<1x8xf32>
    tpu.vector_store %arg6[%6, %c32], %5 {strides = array<i32>} : memref<8x48xf32, #tpu.memory_space<vmem>>, vector<1x8xf32>,
    %c0_6 = arith.constant 0 : index
    %c0_7 = arith.constant 0 : index
    %c0_8 = arith.constant 0 : index
    %8 = vector.load %arg5[%c0_6, %c0_7, %c0_8] : memref<1x1x8xf32, #tpu.memory_space<vmem>>, vector<1x1x8xf32>
    %9 = vector.shape_cast %8 : vector<1x1x8xf32> to vector<1x8xf32>
    %10 = arith.index_cast %arg1 : i32 to index
    %c40 = arith.constant 40 : index
    %11 = vector.load %arg6[%10, %c40] : memref<8x48xf32, #tpu.memory_space<vmem>>, vector<1x8xf32>
    tpu.vector_store %arg6[%10, %c40], %9 {strides = array<i32>} : memref<8x48xf32, #tpu.memory_space<vmem>>, vector<1x8xf32>,
    return
  }
  func.func @transform_0(%arg0: i32, %arg1: i32, %arg2: memref<3x16xi32, #tpu.memory_space<smem>>) -> (i32, i32, i32) {
    %c8_i32 = arith.constant 8 : i32
    %0 = arith.muli %arg0, %c8_i32 : i32
    %1 = arith.addi %0, %arg1 : i32
    %c0 = arith.constant 0 : index
    %2 = arith.index_cast %1 : i32 to index
    %3 = memref.load %arg2[%c0, %2] : memref<3x16xi32, #tpu.memory_space<smem>>
    %c0_i32 = arith.constant 0 : i32
    %c0_i32_0 = arith.constant 0 : i32
    %c0_i32_1 = arith.constant 0 : i32
    return %3, %c0_i32, %c0_i32_0 : i32, i32, i32
  }
  func.func @transform_1(%arg0: i32, %arg1: i32, %arg2: memref<3x16xi32, #tpu.memory_space<smem>>) -> (i32, i32, i32) {
    %c8_i32 = arith.constant 8 : i32
    %0 = arith.muli %arg0, %c8_i32 : i32
    %1 = arith.addi %0, %arg1 : i32
    %c1 = arith.constant 1 : index
    %2 = arith.index_cast %1 : i32 to index
    %3 = memref.load %arg2[%c1, %2] : memref<3x16xi32, #tpu.memory_space<smem>>
    %c0_i32 = arith.constant 0 : i32
    %c0_i32_0 = arith.constant 0 : i32
    %c0_i32_1 = arith.constant 0 : i32
    return %3, %c0_i32, %c0_i32_0 : i32, i32, i32
  }
  func.func @transform_2(%arg0: i32, %arg1: i32, %arg2: memref<3x16xi32, #tpu.memory_space<smem>>) -> (i32, i32, i32) {
    %c8_i32 = arith.constant 8 : i32
    %0 = arith.muli %arg0, %c8_i32 : i32
    %1 = arith.addi %0, %arg1 : i32
    %c2 = arith.constant 2 : index
    %2 = arith.index_cast %1 : i32 to index
    %3 = memref.load %arg2[%c2, %2] : memref<3x16xi32, #tpu.memory_space<smem>>
    %c0_i32 = arith.constant 0 : i32
    %c0_i32_0 = arith.constant 0 : i32
    %c0_i32_1 = arith.constant 0 : i32
    return %3, %c0_i32, %c0_i32_0 : i32, i32, i32
  }
  func.func @transform_3(%arg0: i32, %arg1: i32, %arg2: memref<3x16xi32, #tpu.memory_space<smem>>) -> (i32, i32) {
    %c0_i32 = arith.constant 0 : i32
    %c0_i32_0 = arith.constant 0 : i32
    return %arg0, %c0_i32 : i32, i32
  }
}

</mosaic_0001>

<llo_original>
// kernel: tpu_custom_call.1
$region0: #{tpu_custom_call.1}
  #allocation0 [shape = 'u32[]', space=smem, size = 0x4, offset = 0x4, fixed_abs, tag = 'smem constant byte address 0x4 - core index']
  #allocation1 [shape = 'u32[144,128]{1,0:T(1,128)}', space=vmem, size = 0x12000, scoped, tag = 'internal scratch']
  #allocation2 [shape = 's32[1]{0}', space=sflag, size = 0x4, scoped, tag = 'scoped memory for tpu_custom_call.1']
  #allocation3 [shape = 'u8[2048]{0}', space=smem, size = 0x800, scoped, tag = 'prefetched SMEM operand 0']
  %s0 = inlined_call_operand.vmem [shape: s32[3,16], index: 0, kind: input, shape index: {}]
  %s1 = inlined_call_operand.vmem [shape: f32[32,1,32], index: 1, kind: input, shape index: {}]
  %s2 = inlined_call_operand.vmem [shape: f32[21,1,8], index: 2, kind: input, shape index: {}]
  %s3 = inlined_call_operand.vmem [shape: f32[21,1,8], index: 3, kind: input, shape index: {}]
  %s4 = inlined_call_operand.hbm [shape: f32[16,48], index: 4, kind: output, shape index: {}]
  %s5 = sld [smem:[#allocation0]]
  $region45: #{tpu_custom_call.1} parent=0
    _
  %s7 = ssub.s32 1, %s5
  %s8 = scalar_select 0, %s7, %s5
  %s9 = sshll.u32 %s0, 4
  %s10 = int_to_ptr.vmem [resolvable:$true] %s9
  %12 = dma.vmem_to_smem %s10, 64, [#allocation3], [#allocation2]
  %13 = dma.done [#allocation2], 64
  %14 = sfence
  $region1: #{tpu_custom_call.1} parent=0
    #allocation4 [shape = 'u8[8192]{0}', space=vmem, size = 0x2000, scoped, tag = 'output window, operand 0']
    #allocation5 [shape = 's32[2]{0}', space=sflag, size = 0x8, scoped, tag = 'scoped memory for tpu_custom_call.1']
    %15 = vsyncpa [#allocation5], 0
    %s16 = scalar_lea.sflag [#allocation5], 1
    %17 = vsyncpa %s16, 0
    loop: start=0, step=1, limit=18
    $region2: #{tpu_custom_call.1} parent=1 // loop_pre_header
      _
    $region3: #{tpu_custom_call.1} parent=1 // loop_header
      %s19 = sphi 0, %s23
      %p20 = scmp.ge.s32.totalorder %s19, 18
      %s26 = sphi 0, %s38
      %s27 = sphi 0, %s34
      %s28 = sphi 0, %s26
      %s29 = sphi 0, %s27
      %s30 = sphi 0, %s28
      %s31 = sphi 0, %s29
      %s47 = sphi 0, %s49
      %s50 = sphi 0, %s47
      %s51 = sphi 0, %s50
      %s67 = sphi 0, %s51
      %s93 = sphi 0, %s95
      %s96 = sphi 0, %s93
      %s97 = sphi 0, %s96
      %s113 = sphi 0, %s97
      %s139 = sphi 0, %s141
      %s142 = sphi 0, %s139
      %s143 = sphi 0, %s142
      %s159 = sphi 0, %s143
      %s165 = sphi 0, %s167
      %s168 = sphi 0, %s165
      %s169 = sphi 0, %s168
      %s185 = sphi 0, %s169
    $region4: #{tpu_custom_call.1} parent=1 // loop_header_branch
      %22 = sbr.rel (%p20) target = $region8
    $region5: #{tpu_custom_call.1} parent=1 // loop_body
      %s24 = ssub.s32 %s19, 1
      %s25 = ssub.s32 %s19, 2
      %s32 = sadd.s32 1, %s27
      %p33 = scmp.ge.s32.totalorder %s32, 8
      %s34 = scalar_select %p33, 0, %s32
      %s35 = sadd.s32 1, %s26
      %s36 = scalar_select %p33, %s35, %s26
      %p37 = scmp.ge.s32.totalorder %s36, 2
      %s38 = scalar_select %p37, 0, %s36
      %s39 = smul.u32 %s26, 8
      %s40 = sadd.s32 %s39, %s27
      %s41 = sld [smem:[#allocation3 + %s40]]
      %s42 = smul.u32 %s38, 8
      %s43 = sadd.s32 %s42, %s34
      %s44 = sld [smem:[#allocation3 + %s43]]
      %s45 = ssub.s32 %s41, %s44
      %p46 = scmp.eq.s32.totalorder %s45, 0
      %s48 = sadd.s32 %s47, 1
      %s49 = scalar_select %p46, %s47, %s48
      %p52 = pneg %p46
      %p53 = scmp.eq.s32.totalorder %s19, 15
      %p54 = por %p52, %p53
      %p55 = scmp.ne.s32.totalorder %s47, %s50
      %p56 = scmp.eq.s32.totalorder %s19, 0
      %p57 = por %p55, %p56
      %p58 = scmp.ne.s32.totalorder %s47, %s50
      %p59 = scmp.eq.s32.totalorder %s24, 15
      %p60 = por %p58, %p59
      %p61 = scmp.ne.s32.totalorder %s50, %s51
      %p62 = scmp.eq.s32.totalorder %s24, 0
      %p63 = por %p61, %p62
      %p64 = scmp.ne.s32.totalorder %s50, %s51
      %p65 = scmp.eq.s32.totalorder %s25, 15
      %p66 = por %p64, %p65
      %p68 = scmp.ne.s32.totalorder %s51, %s67
      %p69 = scmp.eq.s32.totalorder %s25, 0
      %p70 = por %p68, %p69
      %s71 = smul.u32 %s26, 8
      %s72 = sadd.s32 %s71, %s27
      %s73 = sshra.s32 %s72, 7
      %s74 = sand.u32 %s72, 127
      %s75 = sadd.s32 %s73, 1
      %s76 = smul.u32 %s75, 128
      %s77 = sshra.s32 %s72, 7
      %s78 = sand.u32 %s72, 127
      %s79 = sadd.s32 %s76, %s78
      %s80 = sld [smem:[#allocation3 + %s79]]
      %s81 = smul.u32 %s38, 8
      %s82 = sadd.s32 %s81, %s34
      %s83 = sshra.s32 %s82, 7
      %s84 = sand.u32 %s82, 127
      %s85 = sadd.s32 %s83, 1
      %s86 = smul.u32 %s85, 128
      %s87 = sshra.s32 %s82, 7
      %s88 = sand.u32 %s82, 127
      %s89 = sadd.s32 %s86, %s88
      %s90 = sld [smem:[#allocation3 + %s89]]
      %s91 = ssub.s32 %s80, %s90
      %p92 = scmp.eq.s32.totalorder %s91, 0
      %s94 = sadd.s32 %s93, 1
      %s95 = scalar_select %p92, %s93, %s94
      %p98 = pneg %p92
      %p99 = scmp.eq.s32.totalorder %s19, 15
      %p100 = por %p98, %p99
      %p101 = scmp.ne.s32.totalorder %s93, %s96
      %p102 = scmp.eq.s32.totalorder %s19, 0
      %p103 = por %p101, %p102
      %p104 = scmp.ne.s32.totalorder %s93, %s96
      %p105 = scmp.eq.s32.totalorder %s24, 15
      %p106 = por %p104, %p105
      %p107 = scmp.ne.s32.totalorder %s96, %s97
      %p108 = scmp.eq.s32.totalorder %s24, 0
      %p109 = por %p107, %p108
      %p110 = scmp.ne.s32.totalorder %s96, %s97
      %p111 = scmp.eq.s32.totalorder %s25, 15
      %p112 = por %p110, %p111
      %p114 = scmp.ne.s32.totalorder %s97, %s113
      %p115 = scmp.eq.s32.totalorder %s25, 0
      %p116 = por %p114, %p115
      %s117 = smul.u32 %s26, 8
      %s118 = sadd.s32 %s117, %s27
      %s119 = sshra.s32 %s118, 7
      %s120 = sand.u32 %s118, 127
      %s121 = sadd.s32 %s119, 2
      %s122 = smul.u32 %s121, 128
      %s123 = sshra.s32 %s118, 7
      %s124 = sand.u32 %s118, 127
      %s125 = sadd.s32 %s122, %s124
      %s126 = sld [smem:[#allocation3 + %s125]]
      %s127 = smul.u32 %s38, 8
      %s128 = sadd.s32 %s127, %s34
      %s129 = sshra.s32 %s128, 7
      %s130 = sand.u32 %s128, 127
      %s131 = sadd.s32 %s129, 2
      %s132 = smul.u32 %s131, 128
      %s133 = sshra.s32 %s128, 7
      %s134 = sand.u32 %s128, 127
      %s135 = sadd.s32 %s132, %s134
      %s136 = sld [smem:[#allocation3 + %s135]]
      %s137 = ssub.s32 %s126, %s136
      %p138 = scmp.eq.s32.totalorder %s137, 0
      %s140 = sadd.s32 %s139, 1
      %s141 = scalar_select %p138, %s139, %s140
      %p144 = pneg %p138
      %p145 = scmp.eq.s32.totalorder %s19, 15
      %p146 = por %p144, %p145
      %p147 = scmp.ne.s32.totalorder %s139, %s142
      %p148 = scmp.eq.s32.totalorder %s19, 0
      %p149 = por %p147, %p148
      %p150 = scmp.ne.s32.totalorder %s139, %s142
      %p151 = scmp.eq.s32.totalorder %s24, 15
      %p152 = por %p150, %p151
      %p153 = scmp.ne.s32.totalorder %s142, %s143
      %p154 = scmp.eq.s32.totalorder %s24, 0
      %p155 = por %p153, %p154
      %p156 = scmp.ne.s32.totalorder %s142, %s143
      %p157 = scmp.eq.s32.totalorder %s25, 15
      %p158 = por %p156, %p157
      %p160 = scmp.ne.s32.totalorder %s143, %s159
      %p161 = scmp.eq.s32.totalorder %s25, 0
      %p162 = por %p160, %p161
      %s163 = ssub.s32 %s26, %s38
      %p164 = scmp.eq.s32.totalorder %s163, 0
      %s166 = sadd.s32 %s165, 1
      %s167 = scalar_select %p164, %s165, %s166
      %p170 = pneg %p164
      %p171 = scmp.eq.s32.totalorder %s19, 15
      %p172 = por %p170, %p171
      %p173 = scmp.ne.s32.totalorder %s165, %s168
      %p174 = scmp.eq.s32.totalorder %s19, 0
      %p175 = por %p173, %p174
      %p176 = scmp.ne.s32.totalorder %s165, %s168
      %p177 = scmp.eq.s32.totalorder %s24, 15
      %p178 = por %p176, %p177
      %p179 = scmp.ne.s32.totalorder %s168, %s169
      %p180 = scmp.eq.s32.totalorder %s24, 0
      %p181 = por %p179, %p180
      %p182 = scmp.ne.s32.totalorder %s168, %s169
      %p183 = scmp.eq.s32.totalorder %s25, 15
      %p184 = por %p182, %p183
      %p186 = scmp.ne.s32.totalorder %s169, %s185
      %p187 = scmp.eq.s32.totalorder %s25, 0
      %p188 = por %p186, %p187
      %p189 = scmp.le.s32.totalorder 1, %s19
      %p190 = scmp.lt.s32.totalorder %s19, 17
      %p191 = pnand %p189, %p190
      %p192 = pneg %p191
      // Predicated region
      $region9: #{tpu_custom_call.1} parent=5 // pred_check
        _
      $region10: #{tpu_custom_call.1} parent=5 // pred_check_branch
        %194 = sbr.rel (%p191) target = $region12
      $region11: #{tpu_custom_call.1} parent=5 // pred_region
        %s195 = ssub.s32 %s19, 1
      $region12: #{tpu_custom_call.1} parent=5 // pred_fallthru
        _
      %p196 = scmp.lt.s32.totalorder %s19, 16
      // Predicated region
      $region13: #{tpu_custom_call.1} parent=5 // pred_check
        %p197 = pneg %p196
      $region14: #{tpu_custom_call.1} parent=5 // pred_check_branch
        %199 = sbr.rel (%p197) target = $region16
      $region15: #{tpu_custom_call.1} parent=5 // pred_region
        // Predicated region
        $region17: #{tpu_custom_call.1} parent=15 // pred_check
          %p200 = pneg %p57
        $region18: #{tpu_custom_call.1} parent=15 // pred_check_branch
          %202 = sbr.rel (%p200) target = $region20
        $region19: #{tpu_custom_call.1} parent=15 // pred_region
          %s203 = smul.u32 %s26, 8
          %s204 = sadd.s32 %s203, %s27
          %s205 = sld [smem:[#allocation3 + %s204]]
          %p206 = scmp.lt.s32.totalorder %s205, 31
          %s207 = scalar_select %p206, %s205, 31
          %s208 = scalar_lea.vmem %s1, %s207
          %s209 = smul.u32 %s26, 8
          %s210 = sadd.s32 %s209, %s27
          %s211 = sld [smem:[#allocation3 + %s210]]
        $region20: #{tpu_custom_call.1} parent=15 // pred_fallthru
          _
        // Predicated region
        $region21: #{tpu_custom_call.1} parent=15 // pred_check
          %p212 = pneg %p103
        $region22: #{tpu_custom_call.1} parent=15 // pred_check_branch
          %214 = sbr.rel (%p212) target = $region24
        $region23: #{tpu_custom_call.1} parent=15 // pred_region
          %s215 = smul.u32 %s26, 8
          %s216 = sadd.s32 %s215, %s27
          %s217 = sshra.s32 %s216, 7
          %s218 = sand.u32 %s216, 127
          %s219 = sadd.s32 %s217, 1
          %s220 = smul.u32 %s219, 128
          %s221 = sshra.s32 %s216, 7
          %s222 = sand.u32 %s216, 127
          %s223 = sadd.s32 %s220, %s222
          %s224 = sld [smem:[#allocation3 + %s223]]
          %p225 = scmp.lt.s32.totalorder %s224, 20
          %s226 = scalar_select %p225, %s224, 20
          %s227 = scalar_lea.vmem %s2, %s226
          %s228 = smul.u32 %s26, 8
          %s229 = sadd.s32 %s228, %s27
          %s230 = sshra.s32 %s229, 7
          %s231 = sand.u32 %s229, 127
          %s232 = sadd.s32 %s230, 1
          %s233 = smul.u32 %s232, 128
          %s234 = sshra.s32 %s229, 7
          %s235 = sand.u32 %s229, 127
          %s236 = sadd.s32 %s233, %s235
          %s237 = sld [smem:[#allocation3 + %s236]]
        $region24: #{tpu_custom_call.1} parent=15 // pred_fallthru
          _
        // Predicated region
        $region25: #{tpu_custom_call.1} parent=15 // pred_check
          %p238 = pneg %p149
        $region26: #{tpu_custom_call.1} parent=15 // pred_check_branch
          %240 = sbr.rel (%p238) target = $region28
        $region27: #{tpu_custom_call.1} parent=15 // pred_region
          %s241 = smul.u32 %s26, 8
          %s242 = sadd.s32 %s241, %s27
          %s243 = sshra.s32 %s242, 7
          %s244 = sand.u32 %s242, 127
          %s245 = sadd.s32 %s243, 2
          %s246 = smul.u32 %s245, 128
          %s247 = sshra.s32 %s242, 7
          %s248 = sand.u32 %s242, 127
          %s249 = sadd.s32 %s246, %s248
          %s250 = sld [smem:[#allocation3 + %s249]]
          %p251 = scmp.lt.s32.totalorder %s250, 20
          %s252 = scalar_select %p251, %s250, 20
          %s253 = scalar_lea.vmem %s3, %s252
          %s254 = smul.u32 %s26, 8
          %s255 = sadd.s32 %s254, %s27
          %s256 = sshra.s32 %s255, 7
          %s257 = sand.u32 %s255, 127
          %s258 = sadd.s32 %s256, 2
          %s259 = smul.u32 %s258, 128
          %s260 = sshra.s32 %s255, 7
          %s261 = sand.u32 %s255, 127
          %s262 = sadd.s32 %s259, %s261
          %s263 = sld [smem:[#allocation3 + %s262]]
        $region28: #{tpu_custom_call.1} parent=15 // pred_fallthru
          _
      $region16: #{tpu_custom_call.1} parent=5 // pred_fallthru
        _
      %p264 = scmp.le.s32.totalorder 1, %s19
      %p265 = scmp.lt.s32.totalorder %s19, 17
      %p266 = pnand %p264, %p265
      %p267 = pneg %p266
      // Predicated region
      $region29: #{tpu_custom_call.1} parent=5 // pred_check
        _
      $region30: #{tpu_custom_call.1} parent=5 // pred_check_branch
        %269 = sbr.rel (%p266) target = $region32
      $region31: #{tpu_custom_call.1} parent=5 // pred_region
        %s270 = ssub.s32 %s19, 1
        %s271 = smul.u32 %s28, 8
        %s272 = sadd.s32 %s271, %s29
        %s273 = sld [smem:[#allocation3 + %s272]]
        %p274 = scmp.lt.s32.totalorder %s273, 31
        %s275 = scalar_select %p274, %s273, 31
        %s276 = scalar_lea.vmem %s1, %s275
        %p277 = pneg %p63
        %p278 = pneg %p60
        %s279 = smul.u32 %s28, 8
        %s280 = sadd.s32 %s279, %s29
        %s281 = sshra.s32 %s280, 7
        %s282 = sand.u32 %s280, 127
        %s283 = sadd.s32 %s281, 1
        %s284 = smul.u32 %s283, 128
        %s285 = sshra.s32 %s280, 7
        %s286 = sand.u32 %s280, 127
        %s287 = sadd.s32 %s284, %s286
        %s288 = sld [smem:[#allocation3 + %s287]]
        %p289 = scmp.lt.s32.totalorder %s288, 20
        %s290 = scalar_select %p289, %s288, 20
        %s291 = scalar_lea.vmem %s2, %s290
        %p292 = pneg %p109
        %p293 = pneg %p106
        %s294 = smul.u32 %s28, 8
        %s295 = sadd.s32 %s294, %s29
        %s296 = sshra.s32 %s295, 7
        %s297 = sand.u32 %s295, 127
        %s298 = sadd.s32 %s296, 2
        %s299 = smul.u32 %s298, 128
        %s300 = sshra.s32 %s295, 7
        %s301 = sand.u32 %s295, 127
        %s302 = sadd.s32 %s299, %s301
        %s303 = sld [smem:[#allocation3 + %s302]]
        %p304 = scmp.lt.s32.totalorder %s303, 20
        %s305 = scalar_select %p304, %s303, 20
        %s306 = scalar_lea.vmem %s3, %s305
        %p307 = pneg %p155
        %p308 = pneg %p152
        %p309 = pneg %p181
        %p310 = pneg %p178
        %s311 = sand.u32 %s168, 1
        %s312 = scalar_lea.sflag [#allocation5], %s311
        %s313 = sand.u32 %s168, 1
        %s314 = smul.addr %s313, 8
        %s315 = scalar_lea.vmem [#allocation4], %s314
        %s316 = smul.u32 %s28, 8
        %s317 = sadd.s32 %s316, %s29
        %s318 = sld [smem:[#allocation3 + %s317]]
        %p319 = scmp.lt.s32.totalorder %s318, 31
        %s320 = scalar_select %p319, %s318, 31
        %s321 = scalar_lea.vmem %s1, %s320
        %s322 = smul.u32 %s28, 8
        %s323 = sadd.s32 %s322, %s29
        %s324 = sld [smem:[#allocation3 + %s323]]
        %s325 = smul.u32 %s28, 8
        %s326 = sadd.s32 %s325, %s29
        %s327 = sshra.s32 %s326, 7
        %s328 = sand.u32 %s326, 127
        %s329 = sadd.s32 %s327, 1
        %s330 = smul.u32 %s329, 128
        %s331 = sshra.s32 %s326, 7
        %s332 = sand.u32 %s326, 127
        %s333 = sadd.s32 %s330, %s332
        %s334 = sld [smem:[#allocation3 + %s333]]
        %p335 = scmp.lt.s32.totalorder %s334, 20
        %s336 = scalar_select %p335, %s334, 20
        %s337 = scalar_lea.vmem %s2, %s336
        %s338 = smul.u32 %s28, 8
        %s339 = sadd.s32 %s338, %s29
        %s340 = sshra.s32 %s339, 7
        %s341 = sand.u32 %s339, 127
        %s342 = sadd.s32 %s340, 1
        %s343 = smul.u32 %s342, 128
        %s344 = sshra.s32 %s339, 7
        %s345 = sand.u32 %s339, 127
        %s346 = sadd.s32 %s343, %s345
        %s347 = sld [smem:[#allocation3 + %s346]]
        %s348 = smul.u32 %s28, 8
        %s349 = sadd.s32 %s348, %s29
        %s350 = sshra.s32 %s349, 7
        %s351 = sand.u32 %s349, 127
        %s352 = sadd.s32 %s350, 2
        %s353 = smul.u32 %s352, 128
        %s354 = sshra.s32 %s349, 7
        %s355 = sand.u32 %s349, 127
        %s356 = sadd.s32 %s353, %s355
        %s357 = sld [smem:[#allocation3 + %s356]]
        %p358 = scmp.lt.s32.totalorder %s357, 20
        %s359 = scalar_select %p358, %s357, 20
        %s360 = scalar_lea.vmem %s3, %s359
        %s361 = smul.u32 %s28, 8
        %s362 = sadd.s32 %s361, %s29
        %s363 = sshra.s32 %s362, 7
        %s364 = sand.u32 %s362, 127
        %s365 = sadd.s32 %s363, 2
        %s366 = smul.u32 %s365, 128
        %s367 = sshra.s32 %s362, 7
        %s368 = sand.u32 %s362, 127
        %s369 = sadd.s32 %s366, %s368
        %s370 = sld [smem:[#allocation3 + %s369]]
        %v371 = vld [vmem:[%s321] sm:$0x1]
        %s372 = scalar_lea.vmem %s315, %s29 [#allocation4]
        %vm373 = vcmask 253952
        %374 = vst.msk [vmem:[%s372] sm:$0x1] %vm373, %v371
        %v375 = vld [vmem:[%s337] sm:$0x1]
        %v377 = vlaneseq
        %v378 = vshrl.u32 %v377, 7
        %v379 = vsub.s32 0, %v378
        %v380 = vrot.slane %v375, %v379
        %381 = vrot.lane.b32.xlu0 %v380, 32
        %v382 = vpop.permute.xlu0 %381
        %vm384 = vcmask 319744
        %385 = vst.msk [vmem:[%s372] sm:$0x1] %vm384, %v382
        %v386 = vld [vmem:[%s360] sm:$0x1]
        %v388 = vlaneseq
        %v389 = vshrl.u32 %v388, 7
        %v390 = vsub.s32 0, %v389
        %v391 = vrot.slane %v386, %v390
        %392 = vrot.lane.b32.xlu0 %v391, 40
        %v393 = vpop.permute.xlu0 %392
        %vm395 = vcmask 385344
        %396 = vst.msk [vmem:[%s372] sm:$0x1] %vm395, %v393
        %s397 = sand.u32 %s168, 1
        %s398 = scalar_lea.sflag [#allocation5], %s397
        %s399 = sand.u32 %s168, 1
        %s400 = smul.addr %s399, 8
        %s401 = scalar_lea.vmem [#allocation4], %s400
        // Predicated region
        $region33: #{tpu_custom_call.1} parent=31 // pred_check
          %p402 = pneg %p178
        $region34: #{tpu_custom_call.1} parent=31 // pred_check_branch
          %404 = sbr.rel (%p402) target = $region36
        $region35: #{tpu_custom_call.1} parent=31 // pred_region
          %s406 = ssub.s32 128, 128
          %407 = vsyncadd %s398, %s406
          %s408 = smul.addr %s28, 128
          %s409 = scalar_lea.hbm %s4, %s408
          %s411 = sshll.u32 %s401, 4
          %s412 = int_to_ptr.vmem [resolvable:$true] %s411
          %414 = dma.vmem_to_hbm [thread:$0]  %s412, 128, %s409, %s398
        $region36: #{tpu_custom_call.1} parent=31 // pred_fallthru
          _
      $region32: #{tpu_custom_call.1} parent=5 // pred_fallthru
        _
      %p415 = scmp.le.s32.totalorder 2, %s19
      // Predicated region
      $region37: #{tpu_custom_call.1} parent=5 // pred_check
        %p416 = pneg %p415
      $region38: #{tpu_custom_call.1} parent=5 // pred_check_branch
        %418 = sbr.rel (%p416) target = $region40
      $region39: #{tpu_custom_call.1} parent=5 // pred_region
        %s419 = ssub.s32 %s19, 2
        // Predicated region
        $region41: #{tpu_custom_call.1} parent=39 // pred_check
          %p420 = pneg %p184
        $region42: #{tpu_custom_call.1} parent=39 // pred_check_branch
          %422 = sbr.rel (%p420) target = $region44
        $region43: #{tpu_custom_call.1} parent=39 // pred_region
          %s423 = sand.u32 %s169, 1
          %s424 = scalar_lea.sflag [#allocation5], %s423
          %s425 = sand.u32 %s169, 1
          %s426 = smul.addr %s425, 8
          %s427 = scalar_lea.vmem [#allocation4], %s426
          %428 = dma.done %s424, 128
        $region44: #{tpu_custom_call.1} parent=39 // pred_fallthru
          _
      $region40: #{tpu_custom_call.1} parent=5 // pred_fallthru
        _
    $region6: #{tpu_custom_call.1} parent=1 // loop_footer
      %s23 = sadd.s32 1, %s19
    $region7: #{tpu_custom_call.1} parent=1 // loop_footer_branch
      %18 = sbr.rel target = $region3
    $region8: #{tpu_custom_call.1} parent=1 // loop_exit
      _
    %429 = vsyncpa [#allocation5], 1
    %s430 = scalar_lea.sflag [#allocation5], 1
    %431 = vsyncpa %s430, 1

</llo_original>
